<compile_context>
chip_gen: v5e
topology: v5e:2x2
jax: 0.10.0
libtpu: 0.0.40
codegen_flags: <defaults>
</compile_context>

<pallas_src>
import functools

import jax
import jax.numpy as jnp
from jax.experimental import pallas as pl
from jax.experimental.pallas import tpu as pltpu


def _side_weighted_kernel(x_ref, t_ref, o_ref, *, weight, weight_side, base_loss):
    x = x_ref[...]
    t = t_ref[...]

    # Promote low-precision floats to f32 for the arithmetic; cast back at the store.
    if jnp.issubdtype(x.dtype, jnp.floating) and jnp.dtype(x.dtype).itemsize < 4:
        cdt = jnp.float32
    else:
        cdt = x.dtype
    xf = x.astype(cdt)
    tf = t.astype(cdt)
    diff = xf - tf

    if base_loss == "l1":
        loss = jnp.abs(diff)
    elif base_loss == "mse":
        loss = diff * diff
    elif base_loss == "smooth_l1":
        # TODO(synk): float dtypes only (0.5 / 1.0 constants); matches SmoothL1Loss(beta=1).
        ad = jnp.abs(diff)
        half = jnp.asarray(0.5, cdt)
        loss = jnp.where(ad < jnp.asarray(1.0, cdt), half * diff * diff, ad - half)
    else:
        raise ValueError(f"unsupported base_loss: {base_loss}")

    if weight_side == "lower":
        cond = xf > tf   # predictions above target get the extra weight -> pulled lower
    else:
        cond = xf < tf   # predictions below target get the extra weight -> pulled higher

    weighting = jnp.where(cond, jnp.asarray(weight, cdt), jnp.asarray(1.0, cdt))
    o_ref[...] = (weighting * loss).astype(o_ref.dtype)


def _choose_block_rows(rows, lanes, itemsize, sublane, target_bytes):
    """Sublane-aligned row block size.

    Goals: <= target_bytes per operand per step; at least 2 grid steps whenever the
    row count allows it (lets "parallel" shard over both v7x TensorCores); prefer a
    size that divides `rows` exactly (no ragged last block) with an even step count.
    """
    if rows <= sublane:
        return rows
    budget = max(sublane, ((target_bytes // (lanes * itemsize)) // sublane) * sublane)
    if rows >= 2 * sublane:
        half = (((rows + 1) // 2) + sublane - 1) // sublane * sublane
        cap = min(budget, half)
    else:
        cap = budget
    if cap >= rows:
        return rows
    lo = max(sublane, (int(cap * 0.75) // sublane) * sublane)
    fallback_divisor = None
    for cand in range(cap, lo - 1, -sublane):
        if rows % cand == 0:
            if (rows // cand) % 2 == 0:
                return cand                      # exact divisor, even number of steps
            if fallback_divisor is None:
                fallback_divisor = cand
    return fallback_divisor if fallback_divisor is not None else cap


def side_weighted_loss(inp, target, *, weight=2.0, weight_side="lower",
                       base_loss="l1", target_block_bytes=4 * 1024 * 1024):
    """Elementwise side-weighted loss; returns same shape/dtype as `inp`."""
    assert inp.shape == target.shape, "input and target must have the same shape"
    orig_shape = inp.shape
    dtype = inp.dtype
    itemsize = jnp.dtype(dtype).itemsize
    # dtype-aware minimum sublane tiling: 8 rows f32, 16 bf16, 32 int8/fp8.
    sublane = max(8, 32 // itemsize)
    n = inp.size

    kernel = functools.partial(
        _side_weighted_kernel,
        weight=float(weight), weight_side=weight_side, base_loss=base_loss)

    # Generation-aware VMEM budget: 3 operands x 2 pipeline buffers x ~4 MiB = 24 MiB;
    # cap the scoped limit at <= 3/4 of physical VMEM (48 MiB on v7x, 48 MiB elsewhere).
    try:
        vmem_cap = int(getattr(pltpu.get_tpu_info(), "vmem_capacity_bytes",
                               64 * 1024 * 1024))
    except Exception:
        vmem_cap = 64 * 1024 * 1024
    vmem_limit = max(32 * 1024 * 1024, min(48 * 1024 * 1024, (vmem_cap * 3) // 4))

    compiler_params = pltpu.CompilerParams(
        dimension_semantics=("parallel",),
        vmem_limit_bytes=vmem_limit,
    )

    x_flat = jnp.ravel(inp)      # contiguous reshape: free, no HBM copy
    t_flat = jnp.ravel(target)

    # Widest lane-dense last dim (multiple of 128) that divides n exactly.
    lanes = next((w for w in (4096, 2048, 1024, 512, 256, 128) if n % w == 0), None)

    if lanes is not None:
        # Main path: lane-dense 2-D slab, no padding or slicing anywhere.
        rows = n // lanes
        block_rows = _choose_block_rows(rows, lanes, itemsize, sublane,
                                        target_block_bytes)
        grid = (pl.cdiv(rows, block_rows),)
        spec = pl.BlockSpec((block_rows, lanes), lambda i: (i, 0))
        out = pl.pallas_call(
            kernel,
            out_shape=jax.ShapeDtypeStruct((rows, lanes), dtype),
            grid_spec=pltpu.PrefetchScalarGridSpec(
                num_scalar_prefetch=0,
                grid=grid,
                in_specs=[spec, spec],
                out_specs=spec,
            ),
            compiler_params=compiler_params,
        )(x_flat.reshape(rows, lanes), t_flat.reshape(rows, lanes))
    else:
        # Ragged path (element count not a multiple of 128): keep the data flat 1-D and
        # let Pallas' partial last grid block mask the tail — no host pad / no slice.
        base = sublane * 128
        if n <= base:
            block_n = n                                     # single full-extent block
        else:
            budget = max(base, ((target_block_bytes // itemsize) // base) * base)
            half = (((n + 1) // 2) + base - 1) // base * base   # forces >= 2 grid steps
            block_n = min(budget, half)
        grid = (pl.cdiv(n, block_n),)
        spec = pl.BlockSpec((block_n,), lambda i: (i,))
        out = pl.pallas_call(
            kernel,
            out_shape=jax.ShapeDtypeStruct((n,), dtype),
            grid_spec=pltpu.PrefetchScalarGridSpec(
                num_scalar_prefetch=0,
                grid=grid,
                in_specs=[spec, spec],
                out_specs=spec,
            ),
            compiler_params=compiler_params,
        )(x_flat, t_flat)

    return out.reshape(orig_shape)


def _reference(inp, target, weight, weight_side, base_loss="l1"):
    x = inp.astype(jnp.float32)
    t = target.astype(jnp.float32)
    diff = x - t
    if base_loss == "l1":
        loss = jnp.abs(diff)
    elif base_loss == "mse":
        loss = diff * diff
    else:  # smooth_l1
        ad = jnp.abs(diff)
        loss = jnp.where(ad < 1.0, 0.5 * diff * diff, ad - 0.5)
    cond = (x > t) if weight_side == "lower" else (x < t)
    weighting = jnp.where(cond, weight, 1.0)
    return (weighting * loss).astype(inp.dtype)


if __name__ == "__main__":
    key = jax.random.PRNGKey(0)
    weight = 3.0

    cases = [
        # (shape, dtype, weight_side, base_loss, atol)
        ((2, 4, 16, 16), jnp.float32,  "lower",  "l1",        1e-6),  # 2-D slab, single block
        ((2, 4, 16, 16), jnp.float32,  "higher", "l1",        1e-6),
        ((2, 4, 16, 16), jnp.float32,  "lower",  "mse",       1e-6),
        ((8, 8, 32, 32), jnp.float32,  "lower",  "smooth_l1", 1e-6),  # 2-D slab, even 2-step grid
        ((2, 4, 16, 16), jnp.bfloat16, "lower",  "l1",        1e-2),  # f32 in-kernel compute
        ((3, 5, 7),      jnp.float32,  "higher", "l1",        1e-6),  # ragged path, full-extent block
        ((3, 500),       jnp.float32,  "lower",  "mse",       1e-6),  # ragged path, masked tail block
    ]

    for shape, dtype, side, base, atol in cases:
        key, k1, k2 = jax.random.split(key, 3)
        x = jax.random.normal(k1, shape, dtype=jnp.float32).astype(dtype)
        t = jax.random.normal(k2, shape, dtype=jnp.float32).astype(dtype)

        out = jax.block_until_ready(
            side_weighted_loss(x, t, weight=weight, weight_side=side, base_loss=base))
        ref = _reference(x, t, weight, side, base)

        assert out.shape == x.shape and out.dtype == x.dtype
        assert jnp.allclose(out.astype(jnp.float32), ref.astype(jnp.float32),
                            atol=atol, rtol=1e-5), \
            f"mismatch vs reference: shape={shape} dtype={dtype} side={side} loss={base}"

    print("KERNEL_OK")
</pallas_src>

<mosaic_0001>
module attributes {stable_mosaic.version = 11 : i64} {
  func.func @_side_weighted_kernel(%arg0: i32, %arg1: memref<1x2048xf32, #tpu.memory_space<vmem>>, %arg2: memref<1x2048xf32, #tpu.memory_space<vmem>>, %arg3: memref<1x2048xf32, #tpu.memory_space<vmem>>) attributes {dimension_semantics = [#tpu.dimension_semantics<parallel>], iteration_bounds = array<i64: 1>, scalar_prefetch = 0 : i64, scratch_operands = 0 : i64, tpu.core_type = #tpu.core_type<tc>, window_params = [{transform_indices = @transform_0, window_bounds = array<i64: 1, 2048>}, {transform_indices = @transform_1, window_bounds = array<i64: 1, 2048>}, {transform_indices = @transform_2, window_bounds = array<i64: 1, 2048>}]} {
    %c0 = arith.constant 0 : index
    %c0_0 = arith.constant 0 : index
    %0 = vector.load %arg1[%c0, %c0_0] : memref<1x2048xf32, #tpu.memory_space<vmem>>, vector<1x2048xf32>
    %c0_1 = arith.constant 0 : index
    %c0_2 = arith.constant 0 : index
    %1 = vector.load %arg2[%c0_1, %c0_2] : memref<1x2048xf32, #tpu.memory_space<vmem>>, vector<1x2048xf32>
    %2 = arith.subf %0, %1 : vector<1x2048xf32>
    %3 = math.absf %2 : vector<1x2048xf32>
    %4 = arith.cmpf ogt, %0, %1 : vector<1x2048xf32>
    %cst = arith.constant 3.000000e+00 : f32
    %cst_3 = arith.constant 1.000000e+00 : f32
    %5 = vector.broadcast %cst : f32 to vector<1x2048xf32>
    %6 = vector.broadcast %cst_3 : f32 to vector<1x2048xf32>
    %7 = arith.select %4, %5, %6 : vector<1x2048xi1>, vector<1x2048xf32>
    %8 = arith.mulf %7, %3 : vector<1x2048xf32>
    %c0_4 = arith.constant 0 : index
    %c0_5 = arith.constant 0 : index
    %9 = vector.load %arg3[%c0_4, %c0_5] : memref<1x2048xf32, #tpu.memory_space<vmem>>, vector<1x2048xf32>
    tpu.vector_store %arg3[%c0_4, %c0_5], %8 {strides = array<i32>} : memref<1x2048xf32, #tpu.memory_space<vmem>>, vector<1x2048xf32>,
    return
  }
  func.func @transform_0(%arg0: i32) -> (i32, i32) {
    %c0_i32 = arith.constant 0 : i32
    %c0_i32_0 = arith.constant 0 : i32
    return %arg0, %c0_i32 : i32, i32
  }
  func.func @transform_1(%arg0: i32) -> (i32, i32) {
    %c0_i32 = arith.constant 0 : i32
    %c0_i32_0 = arith.constant 0 : i32
    return %arg0, %c0_i32 : i32, i32
  }
  func.func @transform_2(%arg0: i32) -> (i32, i32) {
    %c0_i32 = arith.constant 0 : i32
    %c0_i32_0 = arith.constant 0 : i32
    return %arg0, %c0_i32 : i32, i32
  }
}

</mosaic_0001>

<llo_original>
// kernel: tpu_custom_call.1
$region0: #{tpu_custom_call.1}
  #allocation0 [shape = 'u32[]', space=smem, size = 0x4, offset = 0x4, fixed_abs, tag = 'smem constant byte address 0x4 - core index']
  #allocation1 [shape = 'u32[72,128]{1,0:T(1,128)}', space=vmem, size = 0x9000, scoped, tag = 'internal scratch']
  %s0 = inlined_call_operand.hbm [shape: f32[1,2048], index: 0, kind: input, shape index: {}]
  %s1 = inlined_call_operand.hbm [shape: f32[1,2048], index: 1, kind: input, shape index: {}]
  %s2 = inlined_call_operand.hbm [shape: f32[1,2048], index: 2, kind: output, shape index: {}]
  %s3 = sld [smem:[#allocation0]]
  $region26: #{tpu_custom_call.1} parent=0
    _
  %s5 = ssub.s32 1, %s3
  %s6 = scalar_select 0, %s5, %s3
  $region1: #{tpu_custom_call.1} parent=0
    #allocation2 [shape = 'u8[8192]{0}', space=vmem, size = 0x2000, scoped, tag = 'input window, operand 0, single buffered']
    #allocation3 [shape = 's32[1]{0}', space=sflag, size = 0x4, scoped, tag = 'scoped memory for tpu_custom_call.1']
    #allocation4 [shape = 's32[1]{0}', space=sflag, size = 0x4, scoped, tag = 'scoped memory for tpu_custom_call.1']
    #allocation5 [shape = 'u8[8192]{0}', space=vmem, size = 0x2000, scoped, tag = 'input window, operand 1, single buffered']
    #allocation6 [shape = 's32[1]{0}', space=sflag, size = 0x4, scoped, tag = 'scoped memory for tpu_custom_call.1']
    #allocation7 [shape = 'u8[8192]{0}', space=vmem, size = 0x2000, scoped, tag = 'output window, operand 0, single buffered']
    %7 = vsyncpa [#allocation3], 0
    %8 = vsyncpa [#allocation6], 0
    %9 = vsyncpa [#allocation4], 0
    // Predicated region
    $region2: #{tpu_custom_call.1} parent=1 // pred_check
      _
    $region3: #{tpu_custom_call.1} parent=1 // pred_check_branch
      %11 = sbr.rel (0) target = $region5
    $region4: #{tpu_custom_call.1} parent=1 // pred_region
      %13 = vsyncadd [#allocation3], 0
      %s15 = sshll.u32 %s0, 4
      %s16 = int_to_ptr.hbm [resolvable:$true] %s15
      %s17 = sshll.u32 [#allocation2], 4
      %s18 = int_to_ptr.vmem [resolvable:$true] %s17
      %20 = dma.hbm_to_vmem [thread:$0]  %s16, 256, %s18, [#allocation3]
    $region5: #{tpu_custom_call.1} parent=1 // pred_fallthru
      _
    // Predicated region
    $region6: #{tpu_custom_call.1} parent=1 // pred_check
      _
    $region7: #{tpu_custom_call.1} parent=1 // pred_check_branch
      %22 = sbr.rel (0) target = $region9
    $region8: #{tpu_custom_call.1} parent=1 // pred_region
      %24 = vsyncadd [#allocation6], 0
      %s26 = sshll.u32 %s1, 4
      %s27 = int_to_ptr.hbm [resolvable:$true] %s26
      %s28 = sshll.u32 [#allocation5], 4
      %s29 = int_to_ptr.vmem [resolvable:$true] %s28
      %31 = dma.hbm_to_vmem [thread:$0]  %s27, 256, %s29, [#allocation6]
    $region9: #{tpu_custom_call.1} parent=1 // pred_fallthru
      _
    // Predicated region
    $region10: #{tpu_custom_call.1} parent=1 // pred_check
      _
    $region11: #{tpu_custom_call.1} parent=1 // pred_check_branch
      %33 = sbr.rel (0) target = $region13
    $region12: #{tpu_custom_call.1} parent=1 // pred_region
      %35 = dma.done [#allocation3], 256
    $region13: #{tpu_custom_call.1} parent=1 // pred_fallthru
      _
    // Predicated region
    $region14: #{tpu_custom_call.1} parent=1 // pred_check
      _
    $region15: #{tpu_custom_call.1} parent=1 // pred_check_branch
      %37 = sbr.rel (0) target = $region17
    $region16: #{tpu_custom_call.1} parent=1 // pred_region
      %39 = dma.done [#allocation6], 256
    $region17: #{tpu_custom_call.1} parent=1 // pred_fallthru
      _
    %v40 = vld [vmem:[#allocation2] sm:$0xff]
    %v41 = vld [vmem:[#allocation2 + $0x8] sm:$0xff]
    %v42 = vld [vmem:[#allocation5] sm:$0xff]
    %v43 = vld [vmem:[#allocation5 + $0x8] sm:$0xff]
    %v44 = vsub.f32 %v40, %v42
    %v45 = vsub.f32 %v41, %v43
    %v46 = vand.u32 2147483647, %v44
    %v47 = vand.u32 2147483647, %v45
    %vm48 = vcmp.gt.f32.partialorder %v40, %v42
    %vm49 = vcmp.gt.f32.partialorder %v41, %v43
    %v50 = vsel %vm48, 3.0, 1.0
    %v51 = vsel %vm49, 3.0, 1.0
    %v52 = vmul.f32 %v50, %v46
    %v53 = vmul.f32 %v51, %v47
    %54 = vst [vmem:[#allocation7] sm:$0xff] %v52
    %55 = vst [vmem:[#allocation7 + $0x8] sm:$0xff] %v53
    // Predicated region
    $region18: #{tpu_custom_call.1} parent=1 // pred_check
      _
    $region19: #{tpu_custom_call.1} parent=1 // pred_check_branch
      %57 = sbr.rel (0) target = $region21
    $region20: #{tpu_custom_call.1} parent=1 // pred_region
      %59 = vsyncadd [#allocation4], 0
      %s61 = sshll.u32 [#allocation7], 4
      %s62 = int_to_ptr.vmem [resolvable:$true] %s61
      %s63 = sshll.u32 %s2, 4
      %s64 = int_to_ptr.hbm [resolvable:$true] %s63
      %66 = dma.vmem_to_hbm [thread:$0]  %s62, 256, %s64, [#allocation4]
    $region21: #{tpu_custom_call.1} parent=1 // pred_fallthru
      _
    // Predicated region
    $region22: #{tpu_custom_call.1} parent=1 // pred_check
      _
    $region23: #{tpu_custom_call.1} parent=1 // pred_check_branch
      %68 = sbr.rel (0) target = $region25
    $region24: #{tpu_custom_call.1} parent=1 // pred_region
      %70 = dma.done [#allocation4], 256
    $region25: #{tpu_custom_call.1} parent=1 // pred_fallthru
      _
    %71 = vsyncpa [#allocation3], 1
    %72 = vsyncpa [#allocation6], 1
    %73 = vsyncpa [#allocation4], 1

</llo_original>
